<compile_context>
chip_gen: v5e
topology: v5e:2x2
jax: 0.10.0
libtpu: 0.0.40
codegen_flags: <defaults>
</compile_context>

<pallas_src>
import functools

import jax
import jax.numpy as jnp
from jax import lax
from jax.experimental import pallas as pl
from jax.experimental.pallas import tpu as pltpu


_TARGET_BLOCK_BYTES = 2 << 20     # ~2 MiB blocks: >=85% of HBM roofline, modest VMEM


def _shuffle_kernel_strided(x_ref, o_ref, *, groups):
    """out[:, c2*g + g1, :] = in[:, g1*cpg + c2, :]  via `groups` strided stores.

    x_ref / o_ref: (nb, C, tile) VMEM blocks, channels on sublanes, spatial on lanes.
    """
    C = x_ref.shape[1]
    cpg = C // groups
    for g1 in range(groups):
        # Contiguous input group -> every `groups`-th output channel (sublane stride).
        o_ref[:, pl.ds(g1, cpg, stride=groups), :] = (
            x_ref[:, g1 * cpg:(g1 + 1) * cpg, :])


def _shuffle_kernel_rows(x_ref, o_ref, *, groups):
    """Fallback: per-channel row copies (always lowers; store-slot bound)."""
    C = x_ref.shape[1]
    cpg = C // groups
    for co in range(C):
        src = (co % groups) * cpg + co // groups
        o_ref[:, co:co + 1, :] = x_ref[:, src:src + 1, :]


def _vmem_capacity_bytes():
    try:
        return int(pltpu.get_tpu_info().vmem_capacity_bytes)
    except Exception:
        return 64 << 20   # v7x physical VMEM per TC; safe lower bound for all gens


def _choose_tiling(N, C, HW, itemsize, vmem_cap):
    """Pick (samples-per-block, lane-tile, block_bytes) under a byte budget."""
    # 2 input + 2 output pipeline buffers per block; keep comfortably under capacity.
    pipeline_budget = min(vmem_cap // 2, 48 << 20)
    target = min(_TARGET_BLOCK_BYTES, max(pipeline_budget // 4, 128 * 8 * itemsize))

    # Lane tile: a multiple of 128 dividing HW; fall back to the full row when HW is
    # not 128-aligned (block last dim == array dim still satisfies the tiling rule).
    tile = HW
    if HW % 128 == 0:
        while tile % 256 == 0 and C * tile * itemsize > target:
            tile //= 2

    # Batch several samples per block while blocks stay small, keeping >=2 total grid
    # steps when possible so both v7x TensorCores get work (no-op on v5e/v6e).
    nb = 1
    spatial_steps = HW // tile
    block_bytes = C * tile * itemsize
    while (nb * 2 <= N and N % (nb * 2) == 0
           and block_bytes * 2 <= target
           and (N // (nb * 2)) * spatial_steps >= 2):
        nb *= 2
        block_bytes *= 2
    return nb, tile, block_bytes


def shuffle_block_forward(x, groups=2, *, impl="strided", donate_input=False):
    """Channel shuffle on an NCHW tensor, equivalent to PyTorch ShuffleBlock.forward."""
    N, C, H, W = x.shape
    assert C % groups == 0, (C, groups)
    HW = H * W
    orig_dtype = x.dtype
    x3 = x.reshape(N, C, HW)                  # contiguous NCHW -> metadata-only

    # Lane-pack sub-32-bit dtypes into 32-bit words: the shuffle permutes whole
    # channels, so lane contents are opaque and the bit pattern round-trips exactly.
    itemsize = jnp.dtype(orig_dtype).itemsize
    pack = (4 // itemsize) if (itemsize < 4 and HW % (4 // itemsize) == 0) else 1
    if pack > 1:
        x3 = lax.bitcast_convert_type(x3.reshape(N, C, HW // pack, pack), jnp.uint32)

    work_hw = x3.shape[-1]
    work_itemsize = jnp.dtype(x3.dtype).itemsize
    vmem_cap = _vmem_capacity_bytes()
    nb, tile, block_bytes = _choose_tiling(N, C, work_hw, work_itemsize, vmem_cap)
    # Explicit scoped-VMEM limit: 2 in + 2 out buffers plus slack, clamped to HW cap.
    vmem_limit = int(min(max(4 * block_bytes + (4 << 20), 32 << 20),
                         int(vmem_cap * 0.9)))

    kernel = functools.partial(
        _shuffle_kernel_strided if impl == "strided" else _shuffle_kernel_rows,
        groups=groups)

    out3 = pl.pallas_call(
        kernel,
        grid=(N // nb, work_hw // tile),
        in_specs=[pl.BlockSpec((nb, C, tile), lambda n, t: (n, 0, t))],
        out_specs=pl.BlockSpec((nb, C, tile), lambda n, t: (n, 0, t)),
        out_shape=jax.ShapeDtypeStruct(x3.shape, x3.dtype),
        compiler_params=pltpu.CompilerParams(
            dimension_semantics=("parallel", "parallel"),
            vmem_limit_bytes=vmem_limit),
        input_output_aliases=({0: 0} if donate_input else {}),
    )(x3)

    if pack > 1:
        out3 = lax.bitcast_convert_type(out3, orig_dtype).reshape(N, C, HW)
    return out3.reshape(N, C, H, W)


def _shuffle_reference(x, groups=2):
    """Pure-JAX mirror of the PyTorch view/permute/reshape, for verification only."""
    N, C, H, W = x.shape
    g = groups
    return (x.reshape(N, g, C // g, H, W)
             .transpose(0, 2, 1, 3, 4)
             .reshape(N, C, H, W))


if __name__ == "__main__":
    key = jax.random.PRNGKey(0)
    x = jax.random.normal(key, (2, 4, 16, 16), jnp.float32)     # NCHW

    try:
        out = shuffle_block_forward(x, groups=2)                 # strided-store path
        jax.block_until_ready(out)
    except Exception:
        # Robustness guard: fall back to per-row copies if the strided sublane store
        # fails to lower on this backend (correctness identical, slower stores).
        out = shuffle_block_forward(x, groups=2, impl="rows")
        jax.block_until_ready(out)

    assert out.shape == x.shape, out.shape
    assert out.dtype == x.dtype, out.dtype
    expected = _shuffle_reference(x, 2)
    assert bool(jnp.allclose(out, expected)), "mismatch vs reference channel shuffle"
    print("KERNEL_OK")
</pallas_src>

<mosaic_0001>
module attributes {stable_mosaic.version = 11 : i64} {
  func.func @_shuffle_kernel_strided(%arg0: i32, %arg1: i32, %arg2: memref<1x4x256xf32, #tpu.memory_space<vmem>>, %arg3: memref<1x4x256xf32, #tpu.memory_space<vmem>>) attributes {dimension_semantics = [#tpu.dimension_semantics<parallel>, #tpu.dimension_semantics<parallel>], iteration_bounds = array<i64: 2, 1>, scalar_prefetch = 0 : i64, scratch_operands = 0 : i64, tpu.core_type = #tpu.core_type<tc>, window_params = [{transform_indices = @transform_0, window_bounds = array<i64: 1, 4, 256>}, {transform_indices = @transform_1, window_bounds = array<i64: 1, 4, 256>}]} {
    %c0 = arith.constant 0 : index
    %c0_0 = arith.constant 0 : index
    %c0_1 = arith.constant 0 : index
    %0 = vector.load %arg2[%c0, %c0_0, %c0_1] : memref<1x4x256xf32, #tpu.memory_space<vmem>>, vector<1x2x256xf32>
    %c0_2 = arith.constant 0 : index
    %c0_3 = arith.constant 0 : index
    %c0_4 = arith.constant 0 : index
    %1 = tpu.strided_load %arg3[%c0_2, %c0_3, %c0_4] {strides = array<i32: 1, 2, 1>} : memref<1x4x256xf32, #tpu.memory_space<vmem>>, vector<1x2x256xf32>
    tpu.strided_store %arg3[%c0_2, %c0_3, %c0_4], %0 {strides = array<i32: 1, 2, 1>} : memref<1x4x256xf32, #tpu.memory_space<vmem>>, vector<1x2x256xf32>
    %c0_5 = arith.constant 0 : index
    %c2 = arith.constant 2 : index
    %c0_6 = arith.constant 0 : index
    %2 = vector.load %arg2[%c0_5, %c2, %c0_6] : memref<1x4x256xf32, #tpu.memory_space<vmem>>, vector<1x2x256xf32>
    %c0_7 = arith.constant 0 : index
    %c1 = arith.constant 1 : index
    %c0_8 = arith.constant 0 : index
    %3 = tpu.strided_load %arg3[%c0_7, %c1, %c0_8] {strides = array<i32: 1, 2, 1>} : memref<1x4x256xf32, #tpu.memory_space<vmem>>, vector<1x2x256xf32>
    tpu.strided_store %arg3[%c0_7, %c1, %c0_8], %2 {strides = array<i32: 1, 2, 1>} : memref<1x4x256xf32, #tpu.memory_space<vmem>>, vector<1x2x256xf32>
    return
  }
  func.func @transform_0(%arg0: i32, %arg1: i32) -> (i32, i32, i32) {
    %c0_i32 = arith.constant 0 : i32
    %c0_i32_0 = arith.constant 0 : i32
    return %arg0, %c0_i32, %arg1 : i32, i32, i32
  }
  func.func @transform_1(%arg0: i32, %arg1: i32) -> (i32, i32, i32) {
    %c0_i32 = arith.constant 0 : i32
    %c0_i32_0 = arith.constant 0 : i32
    return %arg0, %c0_i32, %arg1 : i32, i32, i32
  }
}

module attributes {stable_mosaic.version = 11 : i64} {
  func.func @_shuffle_kernel_rows(%arg0: i32, %arg1: i32, %arg2: memref<1x4x256xf32, #tpu.memory_space<vmem>>, %arg3: memref<1x4x256xf32, #tpu.memory_space<vmem>>) attributes {dimension_semantics = [#tpu.dimension_semantics<parallel>, #tpu.dimension_semantics<parallel>], iteration_bounds = array<i64: 2, 1>, scalar_prefetch = 0 : i64, scratch_operands = 0 : i64, tpu.core_type = #tpu.core_type<tc>, window_params = [{transform_indices = @transform_0, window_bounds = array<i64: 1, 4, 256>}, {transform_indices = @transform_1, window_bounds = array<i64: 1, 4, 256>}]} {
    %c0 = arith.constant 0 : index
    %c0_0 = arith.constant 0 : index
    %c0_1 = arith.constant 0 : index
    %0 = vector.load %arg2[%c0, %c0_0, %c0_1] : memref<1x4x256xf32, #tpu.memory_space<vmem>>, vector<1x1x256xf32>
    %c0_2 = arith.constant 0 : index
    %c0_3 = arith.constant 0 : index
    %c0_4 = arith.constant 0 : index
    %1 = vector.load %arg3[%c0_2, %c0_3, %c0_4] : memref<1x4x256xf32, #tpu.memory_space<vmem>>, vector<1x1x256xf32>
    tpu.vector_store %arg3[%c0_2, %c0_3, %c0_4], %0 {strides = array<i32>} : memref<1x4x256xf32, #tpu.memory_space<vmem>>, vector<1x1x256xf32>,
    %c0_5 = arith.constant 0 : index
    %c2 = arith.constant 2 : index
    %c0_6 = arith.constant 0 : index
    %2 = vector.load %arg2[%c0_5, %c2, %c0_6] : memref<1x4x256xf32, #tpu.memory_space<vmem>>, vector<1x1x256xf32>
    %c0_7 = arith.constant 0 : index
    %c1 = arith.constant 1 : index
    %c0_8 = arith.constant 0 : index
    %3 = vector.load %arg3[%c0_7, %c1, %c0_8] : memref<1x4x256xf32, #tpu.memory_space<vmem>>, vector<1x1x256xf32>
    tpu.vector_store %arg3[%c0_7, %c1, %c0_8], %2 {strides = array<i32>} : memref<1x4x256xf32, #tpu.memory_space<vmem>>, vector<1x1x256xf32>,
    %c0_9 = arith.constant 0 : index
    %c1_10 = arith.constant 1 : index
    %c0_11 = arith.constant 0 : index
    %4 = vector.load %arg2[%c0_9, %c1_10, %c0_11] : memref<1x4x256xf32, #tpu.memory_space<vmem>>, vector<1x1x256xf32>
    %c0_12 = arith.constant 0 : index
    %c2_13 = arith.constant 2 : index
    %c0_14 = arith.constant 0 : index
    %5 = vector.load %arg3[%c0_12, %c2_13, %c0_14] : memref<1x4x256xf32, #tpu.memory_space<vmem>>, vector<1x1x256xf32>
    tpu.vector_store %arg3[%c0_12, %c2_13, %c0_14], %4 {strides = array<i32>} : memref<1x4x256xf32, #tpu.memory_space<vmem>>, vector<1x1x256xf32>,
    %c0_15 = arith.constant 0 : index
    %c3 = arith.constant 3 : index
    %c0_16 = arith.constant 0 : index
    %6 = vector.load %arg2[%c0_15, %c3, %c0_16] : memref<1x4x256xf32, #tpu.memory_space<vmem>>, vector<1x1x256xf32>
    %c0_17 = arith.constant 0 : index
    %c3_18 = arith.constant 3 : index
    %c0_19 = arith.constant 0 : index
    %7 = vector.load %arg3[%c0_17, %c3_18, %c0_19] : memref<1x4x256xf32, #tpu.memory_space<vmem>>, vector<1x1x256xf32>
    tpu.vector_store %arg3[%c0_17, %c3_18, %c0_19], %6 {strides = array<i32>} : memref<1x4x256xf32, #tpu.memory_space<vmem>>, vector<1x1x256xf32>,
    return
  }
  func.func @transform_0(%arg0: i32, %arg1: i32) -> (i32, i32, i32) {
    %c0_i32 = arith.constant 0 : i32
    %c0_i32_0 = arith.constant 0 : i32
    return %arg0, %c0_i32, %arg1 : i32, i32, i32
  }
  func.func @transform_1(%arg0: i32, %arg1: i32) -> (i32, i32, i32) {
    %c0_i32 = arith.constant 0 : i32
    %c0_i32_0 = arith.constant 0 : i32
    return %arg0, %c0_i32, %arg1 : i32, i32, i32
  }
}

</mosaic_0001>

<llo_original>
// kernel: tpu_custom_call.1
$region0: #{tpu_custom_call.1}
  #allocation0 [shape = 'u32[]', space=smem, size = 0x4, offset = 0x4, fixed_abs, tag = 'smem constant byte address 0x4 - core index']
  #allocation1 [shape = 'u32[72,128]{1,0:T(1,128)}', space=vmem, size = 0x9000, scoped, tag = 'internal scratch']
  %s0 = inlined_call_operand.hbm [shape: f32[2,4,256], index: 0, kind: input, shape index: {}]
  %s1 = inlined_call_operand.hbm [shape: f32[2,4,256], index: 1, kind: output, shape index: {}]
  %s2 = sld [smem:[#allocation0]]
  $region41: #{tpu_custom_call.1} parent=0
    _
  %s4 = ssub.s32 1, %s2
  %s5 = scalar_select 0, %s4, %s2
  $region1: #{tpu_custom_call.1} parent=0
    #allocation2 [shape = 'u8[8192]{0}', space=vmem, size = 0x2000, scoped, tag = 'input window, operand 0']
    #allocation3 [shape = 's32[2]{0}', space=sflag, size = 0x8, scoped, tag = 'scoped memory for tpu_custom_call.1']
    #allocation4 [shape = 's32[2]{0}', space=sflag, size = 0x8, scoped, tag = 'scoped memory for tpu_custom_call.1']
    #allocation5 [shape = 'u8[8192]{0}', space=vmem, size = 0x2000, scoped, tag = 'output window, operand 0']
    %6 = vsyncpa [#allocation3], 0
    %s7 = scalar_lea.sflag [#allocation3], 1
    %8 = vsyncpa %s7, 0
    %9 = vsyncpa [#allocation4], 0
    %s10 = scalar_lea.sflag [#allocation4], 1
    %11 = vsyncpa %s10, 0
    loop: start=0, step=1, limit=4
    $region2: #{tpu_custom_call.1} parent=1 // loop_pre_header
      _
    $region3: #{tpu_custom_call.1} parent=1 // loop_header
      %s13 = sphi 0, %s17
      %p14 = scmp.ge.s32.totalorder %s13, 4
      %s20 = sphi 0, %s32
      %s21 = sphi 0, %s28
      %s22 = sphi 0, %s20
      %s23 = sphi 0, %s21
      %s24 = sphi 0, %s22
      %s25 = sphi 0, %s23
      %s37 = sphi 0, %s39
      %s40 = sphi 0, %s37
      %s41 = sphi 0, %s40
      %s57 = sphi 0, %s41
      %s65 = sphi 0, %s67
      %s68 = sphi 0, %s65
      %s69 = sphi 0, %s68
      %s85 = sphi 0, %s69
    $region4: #{tpu_custom_call.1} parent=1 // loop_header_branch
      %16 = sbr.rel (%p14) target = $region8
    $region5: #{tpu_custom_call.1} parent=1 // loop_body
      %s18 = ssub.s32 %s13, 1
      %s19 = ssub.s32 %s13, 2
      %s26 = sadd.s32 1, %s21
      %p27 = scmp.ge.s32.totalorder %s26, 1
      %s28 = scalar_select %p27, 0, %s26
      %s29 = sadd.s32 1, %s20
      %s30 = scalar_select %p27, %s29, %s20
      %p31 = scmp.ge.s32.totalorder %s30, 2
      %s32 = scalar_select %p31, 0, %s30
      %s33 = ssub.s32 %s20, %s32
      %s34 = ssub.s32 %s21, %s28
      %s35 = sor.u32 %s33, %s34
      %p36 = scmp.eq.s32.totalorder %s35, 0
      %s38 = sadd.s32 %s37, 1
      %s39 = scalar_select %p36, %s37, %s38
      %p42 = pneg %p36
      %p43 = scmp.eq.s32.totalorder %s13, 1
      %p44 = por %p42, %p43
      %p45 = scmp.ne.s32.totalorder %s37, %s40
      %p46 = scmp.eq.s32.totalorder %s13, 0
      %p47 = por %p45, %p46
      %p48 = scmp.ne.s32.totalorder %s37, %s40
      %p49 = scmp.eq.s32.totalorder %s18, 1
      %p50 = por %p48, %p49
      %p51 = scmp.ne.s32.totalorder %s40, %s41
      %p52 = scmp.eq.s32.totalorder %s18, 0
      %p53 = por %p51, %p52
      %p54 = scmp.ne.s32.totalorder %s40, %s41
      %p55 = scmp.eq.s32.totalorder %s19, 1
      %p56 = por %p54, %p55
      %p58 = scmp.ne.s32.totalorder %s41, %s57
      %p59 = scmp.eq.s32.totalorder %s19, 0
      %p60 = por %p58, %p59
      %s61 = ssub.s32 %s20, %s32
      %s62 = ssub.s32 %s21, %s28
      %s63 = sor.u32 %s61, %s62
      %p64 = scmp.eq.s32.totalorder %s63, 0
      %s66 = sadd.s32 %s65, 1
      %s67 = scalar_select %p64, %s65, %s66
      %p70 = pneg %p64
      %p71 = scmp.eq.s32.totalorder %s13, 1
      %p72 = por %p70, %p71
      %p73 = scmp.ne.s32.totalorder %s65, %s68
      %p74 = scmp.eq.s32.totalorder %s13, 0
      %p75 = por %p73, %p74
      %p76 = scmp.ne.s32.totalorder %s65, %s68
      %p77 = scmp.eq.s32.totalorder %s18, 1
      %p78 = por %p76, %p77
      %p79 = scmp.ne.s32.totalorder %s68, %s69
      %p80 = scmp.eq.s32.totalorder %s18, 0
      %p81 = por %p79, %p80
      %p82 = scmp.ne.s32.totalorder %s68, %s69
      %p83 = scmp.eq.s32.totalorder %s19, 1
      %p84 = por %p82, %p83
      %p86 = scmp.ne.s32.totalorder %s69, %s85
      %p87 = scmp.eq.s32.totalorder %s19, 0
      %p88 = por %p86, %p87
      %p89 = scmp.le.s32.totalorder 1, %s13
      %p90 = scmp.lt.s32.totalorder %s13, 3
      %p91 = pnand %p89, %p90
      %p92 = pneg %p91
      // Predicated region
      $region9: #{tpu_custom_call.1} parent=5 // pred_check
        _
      $region10: #{tpu_custom_call.1} parent=5 // pred_check_branch
        %94 = sbr.rel (%p91) target = $region12
      $region11: #{tpu_custom_call.1} parent=5 // pred_region
        %s95 = ssub.s32 %s13, 1
      $region12: #{tpu_custom_call.1} parent=5 // pred_fallthru
        _
      %p96 = scmp.lt.s32.totalorder %s13, 2
      // Predicated region
      $region13: #{tpu_custom_call.1} parent=5 // pred_check
        %p97 = pneg %p96
      $region14: #{tpu_custom_call.1} parent=5 // pred_check_branch
        %99 = sbr.rel (%p97) target = $region16
      $region15: #{tpu_custom_call.1} parent=5 // pred_region
        // Predicated region
        $region17: #{tpu_custom_call.1} parent=15 // pred_check
          %p100 = pneg %p47
        $region18: #{tpu_custom_call.1} parent=15 // pred_check_branch
          %102 = sbr.rel (%p100) target = $region20
        $region19: #{tpu_custom_call.1} parent=15 // pred_region
          %s103 = sand.u32 %s37, 1
          %s104 = scalar_lea.sflag [#allocation3], %s103
          %s105 = sand.u32 %s37, 1
          %s106 = smul.addr %s105, 8
          %s107 = scalar_lea.vmem [#allocation2], %s106
          %s108 = smul.u32 2, %s21
          %110 = vsyncadd %s104, 0
          %s111 = smul.addr %s20, 2
          %s112 = sadd.s32 %s108, %s111
          %s113 = smul.addr %s112, 4
          %s114 = scalar_lea.hbm %s0, %s113
          %s116 = sshll.u32 %s114, 4
          %s117 = int_to_ptr.hbm [resolvable:$true] %s116
          %s118 = sshll.u32 %s107, 4
          %s119 = int_to_ptr.vmem [resolvable:$true] %s118
          %121 = dma.hbm_to_vmem [thread:$0]  %s117, 128, %s119, %s104
        $region20: #{tpu_custom_call.1} parent=15 // pred_fallthru
          _
      $region16: #{tpu_custom_call.1} parent=5 // pred_fallthru
        _
      %p122 = scmp.le.s32.totalorder 1, %s13
      %p123 = scmp.lt.s32.totalorder %s13, 3
      %p124 = pnand %p122, %p123
      %p125 = pneg %p124
      // Predicated region
      $region21: #{tpu_custom_call.1} parent=5 // pred_check
        _
      $region22: #{tpu_custom_call.1} parent=5 // pred_check_branch
        %127 = sbr.rel (%p124) target = $region24
      $region23: #{tpu_custom_call.1} parent=5 // pred_region
        %s128 = ssub.s32 %s13, 1
        %s129 = sand.u32 %s40, 1
        %s130 = scalar_lea.sflag [#allocation3], %s129
        %s131 = sand.u32 %s40, 1
        %s132 = smul.addr %s131, 8
        %s133 = scalar_lea.vmem [#allocation2], %s132
        // Predicated region
        $region25: #{tpu_custom_call.1} parent=23 // pred_check
          %p134 = pneg %p53
        $region26: #{tpu_custom_call.1} parent=23 // pred_check_branch
          %136 = sbr.rel (%p134) target = $region28
        $region27: #{tpu_custom_call.1} parent=23 // pred_region
          %138 = dma.done %s130, 128
        $region28: #{tpu_custom_call.1} parent=23 // pred_fallthru
          _
        %s139 = sand.u32 %s40, 1
        %s140 = scalar_lea.sflag [#allocation3], %s139
        %s141 = sand.u32 %s40, 1
        %s142 = smul.addr %s141, 8
        %s143 = scalar_lea.vmem [#allocation2], %s142
        %p144 = pneg %p53
        %p145 = pneg %p50
        %p146 = pneg %p81
        %p147 = pneg %p78
        %s148 = sand.u32 %s68, 1
        %s149 = scalar_lea.sflag [#allocation4], %s148
        %s150 = sand.u32 %s68, 1
        %s151 = smul.addr %s150, 8
        %s152 = scalar_lea.vmem [#allocation5], %s151
        %s153 = smul.u32 2, %s23
        %s154 = smul.u32 2, %s23
        %v155 = vld [vmem:[%s133] ss:$4 sm:$0x3]
        %v156 = vlaneseq
        %vm157 = vcmp.ge.s32.totalorder %v156, 0
        %vm158 = vcmp.lt.s32.totalorder %v156, 256
        %vm159 = vmand %vm157, %vm158
        %160 = vst.msk [vmem:[%s152] ss:$4 sm:$0x3] %vm159, %v155
        %s161 = scalar_lea.vmem %s133, 2 [#allocation2]
        %v162 = vld [vmem:[%s161] ss:$4 sm:$0x3]
        %s163 = scalar_lea.vmem %s152, 1 [#allocation5]
        %164 = vst.msk [vmem:[%s163] ss:$4 sm:$0x3] %vm159, %v162
        %s165 = scalar_lea.vmem %s133, 1 [#allocation2]
        %v166 = vld [vmem:[%s165] ss:$4 sm:$0x3]
        %s167 = scalar_lea.vmem %s152, 2 [#allocation5]
        %168 = vst.msk [vmem:[%s167] ss:$4 sm:$0x3] %vm159, %v166
        %s169 = scalar_lea.vmem %s133, 3 [#allocation2]
        %v170 = vld [vmem:[%s169] ss:$4 sm:$0x3]
        %s171 = scalar_lea.vmem %s152, 3 [#allocation5]
        %172 = vst.msk [vmem:[%s171] ss:$4 sm:$0x3] %vm159, %v170
        %s173 = sand.u32 %s68, 1
        %s174 = scalar_lea.sflag [#allocation4], %s173
        %s175 = sand.u32 %s68, 1
        %s176 = smul.addr %s175, 8
        %s177 = scalar_lea.vmem [#allocation5], %s176
        // Predicated region
        $region29: #{tpu_custom_call.1} parent=23 // pred_check
          %p178 = pneg %p78
        $region30: #{tpu_custom_call.1} parent=23 // pred_check_branch
          %180 = sbr.rel (%p178) target = $region32
        $region31: #{tpu_custom_call.1} parent=23 // pred_region
          %s181 = smul.u32 2, %s23
          %183 = vsyncadd %s174, 0
          %s184 = smul.addr %s22, 2
          %s185 = sadd.s32 %s181, %s184
          %s186 = smul.addr %s185, 4
          %s187 = scalar_lea.hbm %s1, %s186
          %s189 = sshll.u32 %s177, 4
          %s190 = int_to_ptr.vmem [resolvable:$true] %s189
          %s191 = sshll.u32 %s187, 4
          %s192 = int_to_ptr.hbm [resolvable:$true] %s191
          %194 = dma.vmem_to_hbm [thread:$0]  %s190, 128, %s192, %s174
        $region32: #{tpu_custom_call.1} parent=23 // pred_fallthru
          _
      $region24: #{tpu_custom_call.1} parent=5 // pred_fallthru
        _
      %p195 = scmp.le.s32.totalorder 2, %s13
      // Predicated region
      $region33: #{tpu_custom_call.1} parent=5 // pred_check
        %p196 = pneg %p195
      $region34: #{tpu_custom_call.1} parent=5 // pred_check_branch
        %198 = sbr.rel (%p196) target = $region36
      $region35: #{tpu_custom_call.1} parent=5 // pred_region
        %s199 = ssub.s32 %s13, 2
        // Predicated region
        $region37: #{tpu_custom_call.1} parent=35 // pred_check
          %p200 = pneg %p84
        $region38: #{tpu_custom_call.1} parent=35 // pred_check_branch
          %202 = sbr.rel (%p200) target = $region40
        $region39: #{tpu_custom_call.1} parent=35 // pred_region
          %s203 = sand.u32 %s69, 1
          %s204 = scalar_lea.sflag [#allocation4], %s203
          %s205 = sand.u32 %s69, 1
          %s206 = smul.addr %s205, 8
          %s207 = scalar_lea.vmem [#allocation5], %s206
          %209 = dma.done %s204, 128
        $region40: #{tpu_custom_call.1} parent=35 // pred_fallthru
          _
      $region36: #{tpu_custom_call.1} parent=5 // pred_fallthru
        _
    $region6: #{tpu_custom_call.1} parent=1 // loop_footer
      %s17 = sadd.s32 1, %s13
    $region7: #{tpu_custom_call.1} parent=1 // loop_footer_branch
      %12 = sbr.rel target = $region3
    $region8: #{tpu_custom_call.1} parent=1 // loop_exit
      _
    %210 = vsyncpa [#allocation3], 1
    %s211 = scalar_lea.sflag [#allocation3], 1
    %212 = vsyncpa %s211, 1
    %213 = vsyncpa [#allocation4], 1
    %s214 = scalar_lea.sflag [#allocation4], 1
    %215 = vsyncpa %s214, 1

</llo_original>
